<compile_context>
chip_gen: v7x
topology: tpu7x:2x2x1
jax: 0.10.0
libtpu: 0.0.40
codegen_flags: <defaults>
</compile_context>

<pallas_src>
import math

import jax
import jax.numpy as jnp
from jax import lax
from jax.experimental import pallas as pl
from jax.experimental.pallas import tpu as pltpu


def _round_up(x, m):
    return ((x + m - 1) // m) * m


# -----------------------------------------------------------------------------
# Stage 1:  Xe = degE * (H^T @ X)        (scatter-sum of node features to edges)
# -----------------------------------------------------------------------------
def _edge_aggregate_kernel(h_ref, x_ref, dege_ref, xe_ref, acc_ref):
    k = pl.program_id(1)                      # reduction over node blocks

    @pl.when(k == 0)
    def _():
        acc_ref[...] = jnp.zeros_like(acc_ref)

    # H tile [tN, tE] (bf16), X tile [tN, Cp] (bf16); contract over the node
    # axis (axis 0 of both) -> [tE, Cp].  No transposed copy of H needed.
    acc_ref[...] += lax.dot_general(
        h_ref[...], x_ref[...],
        dimension_numbers=(((0,), (0,)), ((), ())),
        preferred_element_type=jnp.float32)

    @pl.when(k == pl.num_programs(1) - 1)
    def _():
        xe_ref[...] = (acc_ref[...] * dege_ref[...]).astype(xe_ref.dtype)


# -----------------------------------------------------------------------------
# Stage 2:  out = ((1-alpha)*degV * (H @ Xe) + alpha*X0) @ Wmix
#           with Wmix = (1-beta)*I + beta*W^T folded once in the wrapper.
# -----------------------------------------------------------------------------
def _node_update_kernel(h_ref, xe_ref, degvs_ref, x0s_ref, wmix_ref, o_ref, acc_ref):
    k = pl.program_id(1)                      # reduction over edge blocks

    @pl.when(k == 0)
    def _():
        acc_ref[...] = jnp.zeros_like(acc_ref)

    acc_ref[...] += jnp.dot(h_ref[...], xe_ref[...],
                            preferred_element_type=jnp.float32)

    @pl.when(k == pl.num_programs(1) - 1)
    def _():
        xi = acc_ref[...] * degvs_ref[...] + x0s_ref[...]     # GCNII residual mix
        o_ref[...] = jnp.dot(xi, wmix_ref[...],
                             preferred_element_type=jnp.float32
                             ).astype(o_ref.dtype)


def unigcnii_forward(X, vertex, edges, X0, alpha, beta, W, degE, degV, num_edges,
                     *, tile_n=256, tile_e=256):
    """Pallas forward of PyGHyperGCNIIConv.

    W is the nn.Linear weight of shape [out_channels, in_channels]
    (out_channels == in_channels, as required by the GCNII residual).
    """
    N, C = X.shape
    E = int(num_edges)
    assert W.shape[0] == C, "GCNII residual requires out_channels == in_channels"

    f32, bf16 = jnp.float32, jnp.bfloat16

    # --- padded / tiled sizes ------------------------------------------------
    Cp = _round_up(max(C, 128), 128)              # lane-dense channels
    tN = min(tile_n, _round_up(N, 8))             # sublane-granular node tile
    tE = min(tile_e, _round_up(E, 128))           # lane-granular edge tile
    Np = _round_up(N, tN)
    Ep = _round_up(E, tE)

    # --- one-time glue (graph / parameter prep, outside the hot kernels) -----
    # Dense incidence matrix; duplicate pairs accumulate == scatter 'sum'.
    # Small integer counts are exact in bf16.
    H = jnp.zeros((Np, Ep), f32).at[vertex, edges].add(1.0).astype(bf16)

    Xp = jnp.zeros((Np, Cp), bf16).at[:N, :C].set(X.astype(bf16))
    X0s = jnp.zeros((Np, Cp), f32).at[:N, :C].set(alpha * X0.astype(f32))

    degEp = jnp.zeros((Ep, 1), f32).at[:E, :].set(degE.reshape(E, 1).astype(f32))
    degVs = jnp.zeros((Np, 1), f32).at[:N, :].set(
        (1.0 - alpha) * degV.reshape(N, 1).astype(f32))

    # Fold the final residual into the weight:  (1-b)*Xi + b*Xi@W^T == Xi @ Wmix
    Wmix = ((1.0 - beta) * jnp.eye(Cp, dtype=f32)
            ).at[:C, :C].add(beta * W.T.astype(f32))

    cparams = pltpu.CompilerParams(
        dimension_semantics=("parallel", "arbitrary"),
        vmem_limit_bytes=32 * 1024 * 1024)

    # --- stage 1: edge aggregation  Xe = degE * (H^T @ X) ---------------------
    xe = pl.pallas_call(
        _edge_aggregate_kernel,
        out_shape=jax.ShapeDtypeStruct((Ep, Cp), bf16),
        grid_spec=pltpu.PrefetchScalarGridSpec(
            num_scalar_prefetch=0,
            grid=(Ep // tE, Np // tN),
            in_specs=[
                pl.BlockSpec((tN, tE), lambda i, k: (k, i)),   # H
                pl.BlockSpec((tN, Cp), lambda i, k: (k, 0)),   # X (bf16, padded)
                pl.BlockSpec((tE, 1), lambda i, k: (i, 0)),    # degE
            ],
            out_specs=pl.BlockSpec((tE, Cp), lambda i, k: (i, 0)),
            scratch_shapes=[pltpu.VMEM((tE, Cp), f32)]),
        compiler_params=cparams,
    )(H, Xp, degEp)

    # --- stage 2: node update + fused GCNII mix + linear ----------------------
    out = pl.pallas_call(
        _node_update_kernel,
        out_shape=jax.ShapeDtypeStruct((Np, Cp), f32),
        grid_spec=pltpu.PrefetchScalarGridSpec(
            num_scalar_prefetch=0,
            grid=(Np // tN, Ep // tE),
            in_specs=[
                pl.BlockSpec((tN, tE), lambda i, k: (i, k)),   # H
                pl.BlockSpec((tE, Cp), lambda i, k: (k, 0)),   # Xe (bf16)
                pl.BlockSpec((tN, 1), lambda i, k: (i, 0)),    # (1-alpha)*degV
                pl.BlockSpec((tN, Cp), lambda i, k: (i, 0)),   # alpha*X0
                pl.BlockSpec((Cp, Cp), lambda i, k: (0, 0)),   # Wmix (resident)
            ],
            out_specs=pl.BlockSpec((tN, Cp), lambda i, k: (i, 0)),
            scratch_shapes=[pltpu.VMEM((tN, Cp), f32)]),
        compiler_params=cparams,
    )(H, xe, degVs, X0s, Wmix)

    return out[:N, :C]


if __name__ == "__main__":
    key = jax.random.PRNGKey(0)
    N, E, C = 16, 8, 32          # nodes, hyperedges, in_channels == out_channels
    n_pairs = 40                 # number of (vertex, edge) incidence pairs

    k1, k2, k3, k4, k5 = jax.random.split(key, 5)
    vertex = jax.random.randint(k1, (n_pairs,), 0, N)
    edges = jax.random.randint(k2, (n_pairs,), 0, E)
    X = jax.random.normal(k3, (N, C), jnp.float32)
    X0 = jax.random.normal(k4, (N, C), jnp.float32)

    # Deterministic init of nn.Linear(in_channels, out_channels, bias=False) weight.
    bound = 1.0 / math.sqrt(C)
    W = jax.random.uniform(k5, (C, C), jnp.float32, minval=-bound, maxval=bound)

    # degE / degV (normally held by the hypergraph object): inverse degrees.
    Hd = jnp.zeros((N, E), jnp.float32).at[vertex, edges].add(1.0)
    degE = (1.0 / jnp.maximum(Hd.sum(axis=0), 1.0)).reshape(E, 1)
    degV = (1.0 / jnp.maximum(Hd.sum(axis=1), 1.0)).reshape(N, 1)

    alpha, beta = 0.1, 0.5
    # NOTE: self.eps, heads, negative_slope are unused in the reference forward().

    out = unigcnii_forward(X, vertex, edges, X0, alpha, beta, W, degE, degV, E)
    jax.block_until_ready(out)

    # Plain-JAX reference (segment-sum path, same semantics as torch_scatter),
    # mirroring the kernel's bf16 storage of X / Xe (accumulation stays f32).
    Xb = X.astype(jnp.bfloat16).astype(jnp.float32)
    Xe_ref = jax.ops.segment_sum(Xb[vertex], edges, num_segments=E) * degE
    Xe_ref = Xe_ref.astype(jnp.bfloat16).astype(jnp.float32)
    Xv_ref = jax.ops.segment_sum(Xe_ref[edges], vertex, num_segments=N) * degV
    Xi_ref = (1.0 - alpha) * Xv_ref + alpha * X0
    ref = (1.0 - beta) * Xi_ref + beta * (Xi_ref @ W.T)

    assert out.shape == (N, C)
    assert jnp.allclose(out, ref, atol=1e-2, rtol=1e-2), "mismatch vs reference"
    print("KERNEL_OK")
</pallas_src>

<mosaic_0001>
module attributes {stable_mosaic.version = 11 : i64} {
  func.func @_edge_aggregate_kernel(%arg0: i32, %arg1: i32, %arg2: memref<16x128xbf16, #tpu.memory_space<vmem>>, %arg3: memref<16x128xbf16, #tpu.memory_space<vmem>>, %arg4: memref<128x1xf32, #tpu.memory_space<vmem>>, %arg5: memref<128x128xbf16, #tpu.memory_space<vmem>>, %arg6: memref<128x128xf32, #tpu.memory_space<vmem>>) attributes {dimension_semantics = [#tpu.dimension_semantics<parallel>, #tpu.dimension_semantics<arbitrary>], iteration_bounds = array<i64: 1, 1>, scalar_prefetch = 0 : i64, scratch_operands = 1 : i64, tpu.core_type = #tpu.core_type<tc>, window_params = [{transform_indices = @transform_0, window_bounds = array<i64: 16, 128>}, {transform_indices = @transform_1, window_bounds = array<i64: 16, 128>}, {transform_indices = @transform_2, window_bounds = array<i64: 128, 1>}, {transform_indices = @transform_3, window_bounds = array<i64: 128, 128>}]} {
    %c0_i32 = arith.constant 0 : i32
    %0 = arith.cmpi eq, %arg1, %c0_i32 : i32
    %1 = arith.extui %0 : i1 to i32
    %c0_i32_0 = arith.constant 0 : i32
    %2 = arith.cmpi ne, %1, %c0_i32_0 : i32
    scf.if %2 {
      %cst_10 = arith.constant 0.000000e+00 : f32
      %12 = vector.broadcast %cst_10 : f32 to vector<128x128xf32>
      %c0_11 = arith.constant 0 : index
      %c0_12 = arith.constant 0 : index
      %13 = vector.load %arg6[%c0_11, %c0_12] : memref<128x128xf32, #tpu.memory_space<vmem>>, vector<128x128xf32>
      tpu.vector_store %arg6[%c0_11, %c0_12], %12 {strides = array<i32>} : memref<128x128xf32, #tpu.memory_space<vmem>>, vector<128x128xf32>,
    } else {
    }
    %c0 = arith.constant 0 : index
    %c0_1 = arith.constant 0 : index
    %3 = vector.load %arg6[%c0, %c0_1] : memref<128x128xf32, #tpu.memory_space<vmem>>, vector<128x128xf32>
    %c0_2 = arith.constant 0 : index
    %c0_3 = arith.constant 0 : index
    %4 = vector.load %arg2[%c0_2, %c0_3] : memref<16x128xbf16, #tpu.memory_space<vmem>>, vector<16x128xbf16>
    %c0_4 = arith.constant 0 : index
    %c0_5 = arith.constant 0 : index
    %5 = vector.load %arg3[%c0_4, %c0_5] : memref<16x128xbf16, #tpu.memory_space<vmem>>, vector<16x128xbf16>
    %cst = arith.constant dense<0.000000e+00> : vector<128x128xf32>
    %6 = tpu.matmul %4, %5, %cst {dimension_numbers = #tpu.dot_dimension_numbers<[0], [0], [1], [1], [0, 1, 1, 1], [], []>} : vector<16x128xbf16>, vector<16x128xbf16>, vector<128x128xf32> -> vector<128x128xf32>
    %7 = arith.addf %3, %6 : vector<128x128xf32>
    %c0_6 = arith.constant 0 : index
    %c0_7 = arith.constant 0 : index
    %8 = vector.load %arg6[%c0_6, %c0_7] : memref<128x128xf32, #tpu.memory_space<vmem>>, vector<128x128xf32>
    tpu.vector_store %arg6[%c0_6, %c0_7], %7 {strides = array<i32>} : memref<128x128xf32, #tpu.memory_space<vmem>>, vector<128x128xf32>,
    %c0_i32_8 = arith.constant 0 : i32
    %9 = arith.cmpi eq, %arg1, %c0_i32_8 : i32
    %10 = arith.extui %9 : i1 to i32
    %c0_i32_9 = arith.constant 0 : i32
    %11 = arith.cmpi ne, %10, %c0_i32_9 : i32
    scf.if %11 {
      %c0_10 = arith.constant 0 : index
      %c0_11 = arith.constant 0 : index
      %12 = vector.load %arg6[%c0_10, %c0_11] : memref<128x128xf32, #tpu.memory_space<vmem>>, vector<128x128xf32>
      %c0_12 = arith.constant 0 : index
      %c0_13 = arith.constant 0 : index
      %13 = vector.load %arg4[%c0_12, %c0_13] : memref<128x1xf32, #tpu.memory_space<vmem>>, vector<128x1xf32>
      %14 = vector.broadcast %13 : vector<128x1xf32> to vector<128x128xf32>
      %15 = arith.mulf %12, %14 : vector<128x128xf32>
      %16 = arith.truncf %15 : vector<128x128xf32> to vector<128x128xbf16>
      %c0_14 = arith.constant 0 : index
      %c0_15 = arith.constant 0 : index
      %17 = vector.load %arg5[%c0_14, %c0_15] : memref<128x128xbf16, #tpu.memory_space<vmem>>, vector<128x128xbf16>
      tpu.vector_store %arg5[%c0_14, %c0_15], %16 {strides = array<i32>} : memref<128x128xbf16, #tpu.memory_space<vmem>>, vector<128x128xbf16>,
    } else {
    }
    return
  }
  func.func @transform_0(%arg0: i32, %arg1: i32) -> (i32, i32) {
    %c0_i32 = arith.constant 0 : i32
    return %arg1, %arg0 : i32, i32
  }
  func.func @transform_1(%arg0: i32, %arg1: i32) -> (i32, i32) {
    %c0_i32 = arith.constant 0 : i32
    %c0_i32_0 = arith.constant 0 : i32
    return %arg1, %c0_i32 : i32, i32
  }
  func.func @transform_2(%arg0: i32, %arg1: i32) -> (i32, i32) {
    %c0_i32 = arith.constant 0 : i32
    %c0_i32_0 = arith.constant 0 : i32
    return %arg0, %c0_i32 : i32, i32
  }
  func.func @transform_3(%arg0: i32, %arg1: i32) -> (i32, i32) {
    %c0_i32 = arith.constant 0 : i32
    %c0_i32_0 = arith.constant 0 : i32
    return %arg0, %c0_i32 : i32, i32
  }
}

</mosaic_0001>

<llo_original>
// kernel: tpu_custom_call.1
$region0: #{tpu_custom_call.1}
  #allocation0 [shape = 'u32[]', space=smem, size = 0x4, offset = 0x4, fixed_abs, tag = 'smem constant byte address 0x4 - core index']
  #allocation1 [shape = 'u32[144,128]{1,0:T(1,128)}', space=vmem, size = 0x12000, scoped, tag = 'internal scratch']
  #allocation2 [shape = 'f32[128,128]{1,0:T(8,128)}', space=vmem, size = 0x10000, scoped, tag = 'scratch operand']
  %s0 = inlined_call_operand.vmem [shape: bf16[16,128], index: 0, kind: input, shape index: {}]
  %s1 = inlined_call_operand.vmem [shape: bf16[16,128], index: 1, kind: input, shape index: {}]
  %s2 = inlined_call_operand.vmem [shape: f32[128,1], index: 2, kind: input, shape index: {}]
  %s3 = inlined_call_operand.hbm [shape: bf16[128,128], index: 3, kind: output, shape index: {}]
  %s4 = sld [smem:[#allocation0]]
  $region30: #{tpu_custom_call.1} parent=0
    _
  %s6 = ssub.s32 1, %s4
  %s7 = scalar_select 0, %s6, %s4
  $region1: #{tpu_custom_call.1} parent=0
    #allocation3 [shape = 'u8[32768]{0}', space=vmem, size = 0x8000, scoped, tag = 'output window, operand 0, single buffered']
    #allocation4 [shape = 's32[1]{0}', space=sflag, size = 0x4, scoped, tag = 'scoped memory for tpu_custom_call.1']
    %8 = vsyncpa [#allocation4], 0
    // Predicated region
    $region2: #{tpu_custom_call.1} parent=1 // pred_check
      _
    $region3: #{tpu_custom_call.1} parent=1 // pred_check_branch
      %10 = sbr.rel (0) target = $region5
    $region4: #{tpu_custom_call.1} parent=1 // pred_region
      _
    $region5: #{tpu_custom_call.1} parent=1 // pred_fallthru
      _
    // Predicated region
    $region6: #{tpu_custom_call.1} parent=1 // pred_check
      _
    $region7: #{tpu_custom_call.1} parent=1 // pred_check_branch
      %12 = sbr.rel (0) target = $region9
    $region8: #{tpu_custom_call.1} parent=1 // pred_region
      _
    $region9: #{tpu_custom_call.1} parent=1 // pred_fallthru
      _
    // Predicated region
    $region10: #{tpu_custom_call.1} parent=1 // pred_check
      _
    $region11: #{tpu_custom_call.1} parent=1 // pred_check_branch
      %14 = sbr.rel (0) target = $region13
    $region12: #{tpu_custom_call.1} parent=1 // pred_region
      _
    $region13: #{tpu_custom_call.1} parent=1 // pred_fallthru
      _
    %p16 = scmp.eq.s32.totalorder 0, 0
    // Predicated region
    $region14: #{tpu_custom_call.1} parent=1 // pred_check
      %p17 = pneg %p16
    $region15: #{tpu_custom_call.1} parent=1 // pred_check_branch
      %19 = sbr.rel (%p17) target = $region17
    $region16: #{tpu_custom_call.1} parent=1 // pred_region
      %20 = vst [vmem:[#allocation2] sm:$0xff] 0.0
      %21 = vst [vmem:[#allocation2 + $0x8] sm:$0xff] 0.0
      %22 = vst [vmem:[#allocation2 + $0x10] sm:$0xff] 0.0
      %23 = vst [vmem:[#allocation2 + $0x18] sm:$0xff] 0.0
      %24 = vst [vmem:[#allocation2 + $0x20] sm:$0xff] 0.0
      %25 = vst [vmem:[#allocation2 + $0x28] sm:$0xff] 0.0
      %26 = vst [vmem:[#allocation2 + $0x30] sm:$0xff] 0.0
      %27 = vst [vmem:[#allocation2 + $0x38] sm:$0xff] 0.0
      %28 = vst [vmem:[#allocation2 + $0x40] sm:$0xff] 0.0
      %29 = vst [vmem:[#allocation2 + $0x48] sm:$0xff] 0.0
      %30 = vst [vmem:[#allocation2 + $0x50] sm:$0xff] 0.0
      %31 = vst [vmem:[#allocation2 + $0x58] sm:$0xff] 0.0
      %32 = vst [vmem:[#allocation2 + $0x60] sm:$0xff] 0.0
      %33 = vst [vmem:[#allocation2 + $0x68] sm:$0xff] 0.0
      %34 = vst [vmem:[#allocation2 + $0x70] sm:$0xff] 0.0
      %35 = vst [vmem:[#allocation2 + $0x78] sm:$0xff] 0.0
    $region17: #{tpu_custom_call.1} parent=1 // pred_fallthru
      _
    %v36 = vld [vmem:[#allocation2] sm:$0xff]
    %v37 = vld [vmem:[#allocation2 + $0x8] sm:$0xff]
    %v38 = vld [vmem:[#allocation2 + $0x10] sm:$0xff]
    %v39 = vld [vmem:[#allocation2 + $0x18] sm:$0xff]
    %v40 = vld [vmem:[#allocation2 + $0x20] sm:$0xff]
    %v41 = vld [vmem:[#allocation2 + $0x28] sm:$0xff]
    %v42 = vld [vmem:[#allocation2 + $0x30] sm:$0xff]
    %v43 = vld [vmem:[#allocation2 + $0x38] sm:$0xff]
    %v44 = vld [vmem:[#allocation2 + $0x40] sm:$0xff]
    %v45 = vld [vmem:[#allocation2 + $0x48] sm:$0xff]
    %v46 = vld [vmem:[#allocation2 + $0x50] sm:$0xff]
    %v47 = vld [vmem:[#allocation2 + $0x58] sm:$0xff]
    %v48 = vld [vmem:[#allocation2 + $0x60] sm:$0xff]
    %v49 = vld [vmem:[#allocation2 + $0x68] sm:$0xff]
    %v50 = vld [vmem:[#allocation2 + $0x70] sm:$0xff]
    %v51 = vld [vmem:[#allocation2 + $0x78] sm:$0xff]
    %v52 = vld [vmem:[%s0] sm:$0xf]
    %v53 = vld [vmem:[%s0 + $0x4] sm:$0xf]
    %v54 = vld [vmem:[%s1] sm:$0xf]
    %v55 = vld [vmem:[%s1 + $0x4] sm:$0xf]
    %v58 = vunpack.c.l.b16 %v52
    %v59 = vunpack.c.l.b16 %v53
    %v60 = vpack.c.b16 %v59, %v58
    %62 = vxpose.xlu0.c.b16.start [1/8] %v60, 128
    %63 = vxpose.xlu0.c.b16.cont [2/8] 0, 128
    %64 = vxpose.xlu0.c.b16.cont [3/8] 0, 128
    %65 = vxpose.xlu0.c.b16.cont [4/8] 0, 128
    %66 = vxpose.xlu0.c.b16.cont [5/8] 0, 128
    %67 = vxpose.xlu0.c.b16.cont [6/8] 0, 128
    %68 = vxpose.xlu0.c.b16.cont [7/8] 0, 128
    %69 = vxpose.xlu0.c.b16.end [8/8] 0, 128
    %v70 = vpop.trf.xlu0
    %v71 = vpop.trf.xlu0
    %v72 = vpop.trf.xlu0
    %v73 = vpop.trf.xlu0
    %v74 = vpop.trf.xlu0
    %v75 = vpop.trf.xlu0
    %v76 = vpop.trf.xlu0
    %v77 = vpop.trf.xlu0
    %v80 = vunpack.c.l.b16 %v54
    %v81 = vunpack.c.l.b16 %v55
    %v82 = vpack.c.b16 %v81, %v80
    %vm84 = vcmask 130048
    %v86 = vsel %vm84, %v70, 0
    %v89 = vsel %vm84, %v71, 0
    %v92 = vsel %vm84, %v72, 0
    %v95 = vsel %vm84, %v73, 0
    %v98 = vsel %vm84, %v74, 0
    %v101 = vsel %vm84, %v75, 0
    %v104 = vsel %vm84, %v76, 0
    %v107 = vsel %vm84, %v77, 0
    %109 = vmatprep.subr.bf16.mxu0 0
    %110 = vmatpush1.bf16.msra.mxu0 %v82
    %111 = vmatprep.subr.bf16.mxu0 0
    %112 = vmatpush1.bf16.msra.mxu0 0
    %113 = vmatprep.subr.bf16.mxu0 0
    %114 = vmatpush1.bf16.msra.mxu0 0
    %115 = vmatprep.subr.bf16.mxu0 0
    %116 = vmatpush1.bf16.msra.mxu0 0
    %117 = vmatprep.subr.bf16.mxu0 0
    %118 = vmatpush1.bf16.msra.mxu0 0
    %119 = vmatprep.subr.bf16.mxu0 0
    %120 = vmatpush1.bf16.msra.mxu0 0
    %121 = vmatprep.subr.bf16.mxu0 0
    %122 = vmatpush1.bf16.msra.mxu0 0
    %123 = vmatprep.subr.bf16.mxu0 0
    %124 = vmatpush1.bf16.msra.mxu0 0
    %125 = vmatprep.subr.bf16.mxu0 0
    %126 = vmatpush1.bf16.msra.mxu0 0
    %127 = vmatprep.subr.bf16.mxu0 0
    %128 = vmatpush1.bf16.msra.mxu0 0
    %129 = vmatprep.subr.bf16.mxu0 0
    %130 = vmatpush1.bf16.msra.mxu0 0
    %131 = vmatprep.subr.bf16.mxu0 0
    %132 = vmatpush1.bf16.msra.mxu0 0
    %133 = vmatprep.subr.bf16.mxu0 0
    %134 = vmatpush1.bf16.msra.mxu0 0
    %135 = vmatprep.subr.bf16.mxu0 0
    %136 = vmatpush1.bf16.msra.mxu0 0
    %137 = vmatprep.subr.bf16.mxu0 0
    %138 = vmatpush1.bf16.msra.mxu0 0
    %139 = vmatprep.subr.bf16.mxu0 0
    %140 = vmatpush1.bf16.msra.mxu0 0
    %141 = vmatprep.mubr.bf16.mxu0 0
    %142 = vmatmul.mubr.bf16.gmra.mrb[0].mxu0 %v86
    %v143 = vpop.f32.mrb[0].mxu0
    %v144 = vadd.f32 0.0, %v143
    %v145 = vpop.f32.mrb[0].mxu0
    %v146 = vpop.f32.mrb[0].mxu0
    %v147 = vadd.f32 0.0, %v146
    %v148 = vpop.f32.mrb[0].mxu0
    %149 = vmatprep.mubr.bf16.mxu0 0
    %150 = vmatmul.mubr.bf16.gmra.mrb[0].mxu0 %v89
    %v151 = vpop.f32.mrb[0].mxu0
    %v152 = vadd.f32 0.0, %v151
    %v153 = vpop.f32.mrb[0].mxu0
    %v154 = vpop.f32.mrb[0].mxu0
    %v155 = vadd.f32 0.0, %v154
    %v156 = vpop.f32.mrb[0].mxu0
    %157 = vmatprep.mubr.bf16.mxu0 0
    %158 = vmatmul.mubr.bf16.gmra.mrb[0].mxu0 %v92
    %v159 = vpop.f32.mrb[0].mxu0
    %v160 = vadd.f32 0.0, %v159
    %v161 = vpop.f32.mrb[0].mxu0
    %v162 = vpop.f32.mrb[0].mxu0
    %v163 = vadd.f32 0.0, %v162
    %v164 = vpop.f32.mrb[0].mxu0
    %165 = vmatprep.mubr.bf16.mxu0 0
    %166 = vmatmul.mubr.bf16.gmra.mrb[0].mxu0 %v95
    %v167 = vpop.f32.mrb[0].mxu0
    %v168 = vadd.f32 0.0, %v167
    %v169 = vpop.f32.mrb[0].mxu0
    %v170 = vpop.f32.mrb[0].mxu0
    %v171 = vadd.f32 0.0, %v170
    %v172 = vpop.f32.mrb[0].mxu0
    %173 = vmatprep.mubr.bf16.mxu0 0
    %174 = vmatmul.mubr.bf16.gmra.mrb[0].mxu0 %v98
    %v175 = vpop.f32.mrb[0].mxu0
    %v176 = vadd.f32 0.0, %v175
    %v177 = vpop.f32.mrb[0].mxu0
    %v178 = vpop.f32.mrb[0].mxu0
    %v179 = vadd.f32 0.0, %v178
    %v180 = vpop.f32.mrb[0].mxu0
    %181 = vmatprep.mubr.bf16.mxu0 0
    %182 = vmatmul.mubr.bf16.gmra.mrb[0].mxu0 %v101
    %v183 = vpop.f32.mrb[0].mxu0
    %v184 = vadd.f32 0.0, %v183
    %v185 = vpop.f32.mrb[0].mxu0
    %v186 = vpop.f32.mrb[0].mxu0
    %v187 = vadd.f32 0.0, %v186
    %v188 = vpop.f32.mrb[0].mxu0
    %189 = vmatprep.mubr.bf16.mxu0 0
    %190 = vmatmul.mubr.bf16.gmra.mrb[0].mxu0 %v104
    %v191 = vpop.f32.mrb[0].mxu0
    %v192 = vadd.f32 0.0, %v191
    %v193 = vpop.f32.mrb[0].mxu0
    %v194 = vpop.f32.mrb[0].mxu0
    %v195 = vadd.f32 0.0, %v194
    %v196 = vpop.f32.mrb[0].mxu0
    %197 = vmatprep.mubr.bf16.mxu0 0
    %198 = vmatmul.mubr.bf16.gmra.mrb[0].mxu0 %v107
    %v199 = vpop.f32.mrb[0].mxu0
    %v200 = vadd.f32 0.0, %v199
    %v201 = vpop.f32.mrb[0].mxu0
    %v202 = vpop.f32.mrb[0].mxu0
    %v203 = vadd.f32 0.0, %v202
    %v204 = vpop.f32.mrb[0].mxu0
    %205 = vdwg.mxu0
    %v206 = vadd.f32 %v36, %v144
    %v207 = vadd.f32 %v37, %v147
    %v208 = vadd.f32 %v38, %v152
    %v209 = vadd.f32 %v39, %v155
    %v210 = vadd.f32 %v40, %v160
    %v211 = vadd.f32 %v41, %v163
    %v212 = vadd.f32 %v42, %v168
    %v213 = vadd.f32 %v43, %v171
    %v214 = vadd.f32 %v44, %v176
    %v215 = vadd.f32 %v45, %v179
    %v216 = vadd.f32 %v46, %v184
    %v217 = vadd.f32 %v47, %v187
    %v218 = vadd.f32 %v48, %v192
    %v219 = vadd.f32 %v49, %v195
    %v220 = vadd.f32 %v50, %v200
    %v221 = vadd.f32 %v51, %v203
    %222 = vst [vmem:[#allocation2] sm:$0xff] %v206
    %223 = vst [vmem:[#allocation2 + $0x8] sm:$0xff] %v207
    %224 = vst [vmem:[#allocation2 + $0x10] sm:$0xff] %v208
    %225 = vst [vmem:[#allocation2 + $0x18] sm:$0xff] %v209
    %226 = vst [vmem:[#allocation2 + $0x20] sm:$0xff] %v210
    %227 = vst [vmem:[#allocation2 + $0x28] sm:$0xff] %v211
    %228 = vst [vmem:[#allocation2 + $0x30] sm:$0xff] %v212
    %229 = vst [vmem:[#allocation2 + $0x38] sm:$0xff] %v213
    %230 = vst [vmem:[#allocation2 + $0x40] sm:$0xff] %v214
    %231 = vst [vmem:[#allocation2 + $0x48] sm:$0xff] %v215
    %232 = vst [vmem:[#allocation2 + $0x50] sm:$0xff] %v216
    %233 = vst [vmem:[#allocation2 + $0x58] sm:$0xff] %v217
    %234 = vst [vmem:[#allocation2 + $0x60] sm:$0xff] %v218
    %235 = vst [vmem:[#allocation2 + $0x68] sm:$0xff] %v219
    %236 = vst [vmem:[#allocation2 + $0x70] sm:$0xff] %v220
    %237 = vst [vmem:[#allocation2 + $0x78] sm:$0xff] %v221
    // Predicated region
    $region18: #{tpu_custom_call.1} parent=1 // pred_check
      %p238 = pneg %p16
    $region19: #{tpu_custom_call.1} parent=1 // pred_check_branch
      %240 = sbr.rel (%p238) target = $region21
    $region20: #{tpu_custom_call.1} parent=1 // pred_region
      %v241 = vld [vmem:[#allocation2] sm:$0xff]
      %v242 = vld [vmem:[#allocation2 + $0x8] sm:$0xff]
      %v243 = vld [vmem:[#allocation2 + $0x10] sm:$0xff]
      %v244 = vld [vmem:[#allocation2 + $0x18] sm:$0xff]
      %v245 = vld [vmem:[#allocation2 + $0x20] sm:$0xff]
      %v246 = vld [vmem:[#allocation2 + $0x28] sm:$0xff]
      %v247 = vld [vmem:[#allocation2 + $0x30] sm:$0xff]
      %v248 = vld [vmem:[#allocation2 + $0x38] sm:$0xff]
      %v249 = vld [vmem:[#allocation2 + $0x40] sm:$0xff]
      %v250 = vld [vmem:[#allocation2 + $0x48] sm:$0xff]
      %v251 = vld [vmem:[#allocation2 + $0x50] sm:$0xff]
      %v252 = vld [vmem:[#allocation2 + $0x58] sm:$0xff]
      %v253 = vld [vmem:[#allocation2 + $0x60] sm:$0xff]
      %v254 = vld [vmem:[#allocation2 + $0x68] sm:$0xff]
      %v255 = vld [vmem:[#allocation2 + $0x70] sm:$0xff]
      %v256 = vld [vmem:[#allocation2 + $0x78] sm:$0xff]
      %v257 = vld [vmem:[%s2] sm:$0xff]
      %v258 = vld [vmem:[%s2 + $0x8] sm:$0xff]
      %v259 = vld [vmem:[%s2 + $0x10] sm:$0xff]
      %v260 = vld [vmem:[%s2 + $0x18] sm:$0xff]
      %v261 = vld [vmem:[%s2 + $0x20] sm:$0xff]
      %v262 = vld [vmem:[%s2 + $0x28] sm:$0xff]
      %v263 = vld [vmem:[%s2 + $0x30] sm:$0xff]
      %v264 = vld [vmem:[%s2 + $0x38] sm:$0xff]
      %v265 = vld [vmem:[%s2 + $0x40] sm:$0xff]
      %v266 = vld [vmem:[%s2 + $0x48] sm:$0xff]
      %v267 = vld [vmem:[%s2 + $0x50] sm:$0xff]
      %v268 = vld [vmem:[%s2 + $0x58] sm:$0xff]
      %v269 = vld [vmem:[%s2 + $0x60] sm:$0xff]
      %v270 = vld [vmem:[%s2 + $0x68] sm:$0xff]
      %v271 = vld [vmem:[%s2 + $0x70] sm:$0xff]
      %v272 = vld [vmem:[%s2 + $0x78] sm:$0xff]
      %274 = vset.pattern.permute.xlu0 0
      %275 = vperm.xlu0 %274, %v257
      %v276 = vpop.permute.xlu0 %275
      %279 = vset.pattern.permute.xlu0 0
      %280 = vperm.xlu0 %279, %v258
      %v281 = vpop.permute.xlu0 %280
      %284 = vset.pattern.permute.xlu0 0
      %285 = vperm.xlu0 %284, %v259
      %v286 = vpop.permute.xlu0 %285
      %289 = vset.pattern.permute.xlu0 0
      %290 = vperm.xlu0 %289, %v260
      %v291 = vpop.permute.xlu0 %290
      %294 = vset.pattern.permute.xlu0 0
      %295 = vperm.xlu0 %294, %v261
      %v296 = vpop.permute.xlu0 %295
      %299 = vset.pattern.permute.xlu0 0
      %300 = vperm.xlu0 %299, %v262
      %v301 = vpop.permute.xlu0 %300
      %304 = vset.pattern.permute.xlu0 0
      %305 = vperm.xlu0 %304, %v263
      %v306 = vpop.permute.xlu0 %305
      %309 = vset.pattern.permute.xlu0 0
      %310 = vperm.xlu0 %309, %v264
      %v311 = vpop.permute.xlu0 %310
      %314 = vset.pattern.permute.xlu0 0
      %315 = vperm.xlu0 %314, %v265
      %v316 = vpop.permute.xlu0 %315
      %319 = vset.pattern.permute.xlu0 0
      %320 = vperm.xlu0 %319, %v266
      %v321 = vpop.permute.xlu0 %320
      %324 = vset.pattern.permute.xlu0 0
      %325 = vperm.xlu0 %324, %v267
      %v326 = vpop.permute.xlu0 %325
      %329 = vset.pattern.permute.xlu0 0
      %330 = vperm.xlu0 %329, %v268
      %v331 = vpop.permute.xlu0 %330
      %334 = vset.pattern.permute.xlu0 0
      %335 = vperm.xlu0 %334, %v269
      %v336 = vpop.permute.xlu0 %335
      %339 = vset.pattern.permute.xlu0 0
      %340 = vperm.xlu0 %339, %v270
      %v341 = vpop.permute.xlu0 %340
      %344 = vset.pattern.permute.xlu0 0
      %345 = vperm.xlu0 %344, %v271
      %v346 = vpop.permute.xlu0 %345
      %349 = vset.pattern.permute.xlu0 0
      %350 = vperm.xlu0 %349, %v272
      %v351 = vpop.permute.xlu0 %350
      %v353 = vmul.f32 %v241, %v276
      %v354 = vmul.f32 %v242, %v281
      %v355 = vmul.f32 %v243, %v286
      %v356 = vmul.f32 %v244, %v291
      %v357 = vmul.f32 %v245, %v296
      %v358 = vmul.f32 %v246, %v301
      %v359 = vmul.f32 %v247, %v306
      %v360 = vmul.f32 %v248, %v311
      %v361 = vmul.f32 %v249, %v316
      %v362 = vmul.f32 %v250, %v321
      %v363 = vmul.f32 %v251, %v326
      %v364 = vmul.f32 %v252, %v331
      %v365 = vmul.f32 %v253, %v336
      %v366 = vmul.f32 %v254, %v341
      %v367 = vmul.f32 %v255, %v346
      %v368 = vmul.f32 %v256, %v351
      %v369 = vpack.c.bf16 %v354, %v353
      %v370 = vpack.c.bf16 %v356, %v355
      %v371 = vpack.c.bf16 %v358, %v357
      %v372 = vpack.c.bf16 %v360, %v359
      %v373 = vpack.c.bf16 %v362, %v361
      %v374 = vpack.c.bf16 %v364, %v363
      %v375 = vpack.c.bf16 %v366, %v365
      %v376 = vpack.c.bf16 %v368, %v367
      %v385 = vunpack.c.l.b16 %v369
      %v386 = vunpack.c.h.b16 %v369
      %v387 = vunpack.c.l.b16 %v370
      %v388 = vunpack.c.h.b16 %v370
      %v389 = vunpack.c.l.b16 %v371
      %v390 = vunpack.c.h.b16 %v371
      %v391 = vunpack.c.l.b16 %v372
      %v392 = vunpack.c.h.b16 %v372
      %v393 = vunpack.c.l.b16 %v373
      %v394 = vunpack.c.h.b16 %v373
      %v395 = vunpack.c.l.b16 %v374
      %v396 = vunpack.c.h.b16 %v374
      %v397 = vunpack.c.l.b16 %v375
      %v398 = vunpack.c.h.b16 %v375
      %v399 = vunpack.c.l.b16 %v376
      %v400 = vunpack.c.h.b16 %v376
      %v401 = vpack.c.b16 %v385, %v385
      %v402 = vpack.c.b16 %v386, %v386
      %v403 = vpack.c.b16 %v387, %v387
      %v404 = vpack.c.b16 %v388, %v388
      %v405 = vpack.c.b16 %v389, %v389
      %v406 = vpack.c.b16 %v390, %v390
      %v407 = vpack.c.b16 %v391, %v391
      %v408 = vpack.c.b16 %v392, %v392
      %v409 = vpack.c.b16 %v393, %v393
      %v410 = vpack.c.b16 %v394, %v394
      %v411 = vpack.c.b16 %v395, %v395
      %v412 = vpack.c.b16 %v396, %v396
      %v413 = vpack.c.b16 %v397, %v397
      %v414 = vpack.c.b16 %v398, %v398
      %v415 = vpack.c.b16 %v399, %v399
      %v416 = vpack.c.b16 %v400, %v400
      %433 = vst [vmem:[#allocation3] sm:$0xf] %v401
      %434 = vst [vmem:[#allocation3 + $0x4] sm:$0xf] %v402
      %435 = vst [vmem:[#allocation3 + $0x8] sm:$0xf] %v403
      %436 = vst [vmem:[#allocation3 + $0xc] sm:$0xf] %v404
      %437 = vst [vmem:[#allocation3 + $0x10] sm:$0xf] %v405
      %438 = vst [vmem:[#allocation3 + $0x14] sm:$0xf] %v406
      %439 = vst [vmem:[#allocation3 + $0x18] sm:$0xf] %v407
      %440 = vst [vmem:[#allocation3 + $0x1c] sm:$0xf] %v408
      %441 = vst [vmem:[#allocation3 + $0x20] sm:$0xf] %v409
      %442 = vst [vmem:[#allocation3 + $0x24] sm:$0xf] %v410
      %443 = vst [vmem:[#allocation3 + $0x28] sm:$0xf] %v411
      %444 = vst [vmem:[#allocation3 + $0x2c] sm:$0xf] %v412
      %445 = vst [vmem:[#allocation3 + $0x30] sm:$0xf] %v413
      %446 = vst [vmem:[#allocation3 + $0x34] sm:$0xf] %v414
      %447 = vst [vmem:[#allocation3 + $0x38] sm:$0xf] %v415
      %448 = vst [vmem:[#allocation3 + $0x3c] sm:$0xf] %v416
    $region21: #{tpu_custom_call.1} parent=1 // pred_fallthru
      _
    // Predicated region
    $region22: #{tpu_custom_call.1} parent=1 // pred_check
      _
    $region23: #{tpu_custom_call.1} parent=1 // pred_check_branch
      %450 = sbr.rel (0) target = $region25
    $region24: #{tpu_custom_call.1} parent=1 // pred_region
      %s452 = ssub.s32 1024, 1024
      %453 = vsyncadd [#allocation4], %s452
      %s454 = sshll.u32 [#allocation3], 4
      %s455 = int_to_ptr.vmem [resolvable:$true] %s454
      %460 = dma.vmem_to_hbm [thread:$0]  %s455, 1024, %s3, [#allocation4], 64, 64, 4
    $region25: #{tpu_custom_call.1} parent=1 // pred_fallthru
      _
    // Predicated region
    $region26: #{tpu_custom_call.1} parent=1 // pred_check
      _
    $region27: #{tpu_custom_call.1} parent=1 // pred_check_branch
      %462 = sbr.rel (0) target = $region29
    $region28: #{tpu_custom_call.1} parent=1 // pred_region
      %463 = dma.done [#allocation4], 1024
    $region29: #{tpu_custom_call.1} parent=1 // pred_fallthru
      _
    %464 = vsyncpa [#allocation4], 1

</llo_original>
